<compile_context>
chip_gen: v7x
topology: tpu7x:2x2x1
jax: 0.10.0
libtpu: 0.0.40
codegen_flags: <defaults>
</compile_context>

<pallas_src>
import jax
import jax.numpy as jnp
from jax.experimental import pallas as pl
from jax.experimental.pallas import tpu as pltpu


# --------------------------------------------------------------------------
# Kernel
# --------------------------------------------------------------------------
def highway_kernel(x_ref, w_ref, b_ref, o_ref):
    x = x_ref[...]                                   # (tm, Dp) f32 residual path
    dp = x.shape[-1]

    # Fused fc1|fc2: single MXU matmul, bf16 operands, f32 accumulation.
    y = jnp.dot(x.astype(jnp.bfloat16), w_ref[...],
                preferred_element_type=jnp.float32) + b_ref[...]   # (tm, 2*Dp)

    g = jnp.maximum(y[:, :dp], 0.0)                  # relu(fc1)    (VPU)
    t = jax.nn.sigmoid(y[:, dp:])                    # sigmoid(fc2) (EUP)

    # Highway gate in f32, residual uses the original (un-cast) x.
    o_ref[...] = (t * g + (1.0 - t) * x).astype(o_ref.dtype)


# --------------------------------------------------------------------------
# Generation-aware tiling
# --------------------------------------------------------------------------
def _tpu_target():
    """Returns (vmem_budget_bytes, num_tensorcores) for the local TPU gen."""
    kind = ""
    try:
        kind = jax.devices()[0].device_kind.lower()
    except Exception:
        pass
    if "v7" in kind:
        return 48 << 20, 2        # v7x: 64 MiB physical -> leave headroom, 2 TCs
    if "v5" in kind or "v6" in kind:
        return 100 << 20, 1       # v5e/v6e: 128 MiB physical, 1 TC
    return 48 << 20, 1            # unknown: conservative budget


def _pick_tm(B, Dp, *, vmem_budget, num_cores, weight_bytes):
    """Batch tile: multiple of 8 (f32 sublane), sized against the VMEM budget
    (x/out double-buffers + the f32 (tm, 2Dp) matmul intermediate/temps),
    capped at 2048 rows; only force a 2-way split for v7x's two TensorCores
    and only when each half keeps >= 512 rows."""
    # Per-row VMEM: x f32 x2 bufs + out f32 x2 bufs + ~2x (2*Dp) f32 temps.
    per_row = (4 * Dp) * 2 + (4 * Dp) * 2 + (4 * 2 * Dp) * 2     # = 32 * Dp bytes
    avail = max(vmem_budget - weight_bytes, per_row * 8)
    tm_cap = max(8, min(2048, (avail // per_row) // 8 * 8))

    if B <= tm_cap:
        tm = B                                        # single full-array block
        if num_cores >= 2:
            half = -(-B // 2)
            if half >= 512:                           # worth sharding across 2 TCs
                tm = ((half + 7) // 8) * 8
        return tm
    return tm_cap


# --------------------------------------------------------------------------
# One-time parameter preparation (hoisted out of the forward hot path)
# --------------------------------------------------------------------------
def prepare_highway_params(w1, b1, w2, b2):
    """Fuse/pad/cast the Highway weights once.

    w1, w2: (D, D) in (in, out) layout (nn.Linear weight pre-transposed).
    b1, b2: (D,) or (1, D).
    Returns (w12 bf16 (Dp, 2*Dp), b12 f32 (1, 2*Dp), D, Dp).
    """
    D = w1.shape[0]
    Dp = ((D + 127) // 128) * 128
    pad = Dp - D
    w1p = jnp.pad(w1, ((0, pad), (0, pad)))
    w2p = jnp.pad(w2, ((0, pad), (0, pad)))
    b1p = jnp.pad(jnp.reshape(b1, (1, D)), ((0, 0), (0, pad)))
    b2p = jnp.pad(jnp.reshape(b2, (1, D)), ((0, 0), (0, pad)))
    w12 = jnp.concatenate([w1p, w2p], axis=1).astype(jnp.bfloat16)   # (Dp, 2*Dp)
    b12 = jnp.concatenate([b1p, b2p], axis=1).astype(jnp.float32)    # (1, 2*Dp)
    return w12, b12, D, Dp


# --------------------------------------------------------------------------
# Forward pass using prepared params
# --------------------------------------------------------------------------
def highway_apply(x, params, *, tm=None, out_dtype=None):
    """x: (B, D).  params: output of prepare_highway_params()."""
    w12, b12, D, Dp = params
    B = x.shape[0]
    assert x.shape[1] == D, "Highway requires in_size == out_size == D"
    out_dtype = out_dtype if out_dtype is not None else x.dtype

    vmem_budget, num_cores = _tpu_target()

    pad = Dp - D
    # Fast path: when D % 128 == 0 there is no activation pad / output slice.
    xp = x if pad == 0 else jnp.pad(x, ((0, 0), (0, pad)))

    # Resident weight/bias: single-buffer them once they are large enough for
    # the wasted second buffer to matter (keeps the small-D path unchanged).
    big_weight = Dp >= 512
    n_w_buf = 1 if big_weight else 2
    w_kwargs = {"pipeline_mode": pl.Buffered(1)} if big_weight else {}
    weight_bytes = w12.size * 2 * n_w_buf + b12.size * 4 * n_w_buf

    if tm is None:
        tm = _pick_tm(B, Dp, vmem_budget=vmem_budget, num_cores=num_cores,
                      weight_bytes=weight_bytes)
    grid = (pl.cdiv(B, tm),)

    cost = pl.CostEstimate(
        flops=2 * B * Dp * (2 * Dp) + 6 * B * Dp,
        transcendentals=B * Dp,                       # sigmoid exp
        bytes_accessed=4 * B * Dp                     # x in (f32)
                       + B * Dp * jnp.dtype(out_dtype).itemsize   # out
                       + w12.size * 2                 # fused weights (bf16)
                       + b12.size * 4,                # fused bias (f32)
    )

    out_p = pl.pallas_call(
        highway_kernel,
        out_shape=jax.ShapeDtypeStruct((B, Dp), out_dtype),
        grid_spec=pltpu.PrefetchScalarGridSpec(
            num_scalar_prefetch=0,
            grid=grid,
            in_specs=[
                pl.BlockSpec((tm, Dp), lambda i: (i, 0)),                    # x tile
                pl.BlockSpec((Dp, 2 * Dp), lambda i: (0, 0), **w_kwargs),    # W1|W2 (resident)
                pl.BlockSpec((1, 2 * Dp), lambda i: (0, 0), **w_kwargs),     # b1|b2 (resident)
            ],
            out_specs=pl.BlockSpec((tm, Dp), lambda i: (i, 0)),
        ),
        compiler_params=pltpu.CompilerParams(
            dimension_semantics=("parallel",),
            vmem_limit_bytes=int(vmem_budget),
        ),
        cost_estimate=cost,
    )(xp, w12, b12)

    return out_p if pad == 0 else out_p[:, :D]


def highway(x, w1, b1, w2, b2, *, tm=None, out_dtype=None):
    """Convenience wrapper (prep + apply).  Prefer prepare_highway_params()
    once + highway_apply() per call so the weight prep is not re-run."""
    params = prepare_highway_params(w1, b1, w2, b2)
    return highway_apply(x, params, tm=tm, out_dtype=out_dtype)


# --------------------------------------------------------------------------
# Pure-JAX reference
# --------------------------------------------------------------------------
def highway_ref(x, w1, b1, w2, b2, mxu_dtype=jnp.float32):
    """mxu_dtype=bf16 mimics the kernel's matmul precision."""
    xm = x.astype(mxu_dtype)
    g = jax.nn.relu(jnp.dot(xm, w1.astype(mxu_dtype),
                            preferred_element_type=jnp.float32) + b1)
    t = jax.nn.sigmoid(jnp.dot(xm, w2.astype(mxu_dtype),
                               preferred_element_type=jnp.float32) + b2)
    return t * g + (1.0 - t) * x


# --------------------------------------------------------------------------
# Demo / self-test
# --------------------------------------------------------------------------
if __name__ == "__main__":
    key = jax.random.PRNGKey(0)

    def make_inputs(key, B, D):
        k_x, k_w1, k_b1, k_w2, k_b2 = jax.random.split(key, 5)
        x = jax.random.normal(k_x, (B, D), dtype=jnp.float32)
        bound = 1.0 / jnp.sqrt(D)
        # nn.Linear weights are (out, in); stored pre-transposed as (in, out).
        w1 = jax.random.uniform(k_w1, (D, D), minval=-bound, maxval=bound, dtype=jnp.float32)
        b1 = jax.random.uniform(k_b1, (1, D), minval=-bound, maxval=bound, dtype=jnp.float32)
        w2 = jax.random.uniform(k_w2, (D, D), minval=-bound, maxval=bound, dtype=jnp.float32)
        b2 = jax.random.uniform(k_b2, (1, D), minval=-bound, maxval=bound, dtype=jnp.float32)
        return x, w1, b1, w2, b2

    def check(out, x, w1, b1, w2, b2):
        # Tight check vs. a reference with the same bf16 MXU precision.
        ref_bf16 = highway_ref(x, w1, b1, w2, b2, mxu_dtype=jnp.bfloat16)
        assert jnp.allclose(out, ref_bf16, atol=1e-3, rtol=1e-3), \
            float(jnp.max(jnp.abs(out - ref_bf16)))
        # Looser check vs. full-f32 PyTorch semantics (bf16 matmul rounding only).
        ref_f32 = highway_ref(x, w1, b1, w2, b2)
        assert jnp.allclose(out, ref_f32, atol=6e-2, rtol=6e-2), \
            float(jnp.max(jnp.abs(out - ref_f32)))

    # --- Test 1: the module's small demo shape (needs lane padding D=32->128).
    k1, k2 = jax.random.split(key)
    x, w1, b1, w2, b2 = make_inputs(k1, B=8, D=32)
    params = prepare_highway_params(w1, b1, w2, b2)      # one-time weight prep
    out = jax.block_until_ready(highway_apply(x, params))
    assert out.shape == (8, 32)
    check(out, x, w1, b1, w2, b2)

    # --- Test 2: D % 128 == 0 fast path (no pad/slice), multi-step grid with a
    #     partial last block (B=200, tm=64 -> 4 steps, last block 8 rows).
    x2, w1b, b1b, w2b, b2b = make_inputs(k2, B=200, D=128)
    params2 = prepare_highway_params(w1b, b1b, w2b, b2b)
    out2 = jax.block_until_ready(highway_apply(x2, params2, tm=64))
    assert out2.shape == (200, 128)
    check(out2, x2, w1b, b1b, w2b, b2b)

    print("KERNEL_OK")
</pallas_src>

<mosaic_0001>
module attributes {stable_mosaic.version = 11 : i64} {
  func.func @highway_kernel(%arg0: i32, %arg1: memref<8x128xf32, #tpu.memory_space<vmem>>, %arg2: memref<128x256xbf16, #tpu.memory_space<vmem>>, %arg3: memref<1x256xf32, #tpu.memory_space<vmem>>, %arg4: memref<8x128xf32, #tpu.memory_space<vmem>>) attributes {dimension_semantics = [#tpu.dimension_semantics<parallel>], iteration_bounds = array<i64: 1>, scalar_prefetch = 0 : i64, scratch_operands = 0 : i64, tpu.core_type = #tpu.core_type<tc>, window_params = [{transform_indices = @transform_0, window_bounds = array<i64: 8, 128>}, {pipeline_mode = #tpu.pipeline_mode<synchronous>, transform_indices = @transform_1, window_bounds = array<i64: 128, 256>}, {pipeline_mode = #tpu.pipeline_mode<synchronous>, transform_indices = @transform_2, window_bounds = array<i64: 1, 256>}, {transform_indices = @transform_3, window_bounds = array<i64: 8, 128>}]} {
    %c0 = arith.constant 0 : index
    %c0_0 = arith.constant 0 : index
    %0 = vector.load %arg1[%c0, %c0_0] : memref<8x128xf32, #tpu.memory_space<vmem>>, vector<8x128xf32>
    %1 = arith.truncf %0 : vector<8x128xf32> to vector<8x128xbf16>
    %c0_1 = arith.constant 0 : index
    %c0_2 = arith.constant 0 : index
    %2 = vector.load %arg2[%c0_1, %c0_2] : memref<128x256xbf16, #tpu.memory_space<vmem>>, vector<128x256xbf16>
    %cst = arith.constant dense<0.000000e+00> : vector<8x256xf32>
    %3 = tpu.matmul %1, %2, %cst {dimension_numbers = #tpu.dot_dimension_numbers<[1], [0], [0], [1], [0, 0, 1, 1], [], []>} : vector<8x128xbf16>, vector<128x256xbf16>, vector<8x256xf32> -> vector<8x256xf32>
    %c0_3 = arith.constant 0 : index
    %c0_4 = arith.constant 0 : index
    %4 = vector.load %arg3[%c0_3, %c0_4] : memref<1x256xf32, #tpu.memory_space<vmem>>, vector<1x256xf32>
    %5 = vector.broadcast %4 : vector<1x256xf32> to vector<8x256xf32>
    %6 = arith.addf %3, %5 : vector<8x256xf32>
    %7 = vector.extract_strided_slice %6 {offsets = [0, 0], sizes = [8, 128], strides = [1, 1]} : vector<8x256xf32> to vector<8x128xf32>
    %cst_5 = arith.constant 0.000000e+00 : f32
    %8 = vector.broadcast %cst_5 : f32 to vector<8x128xf32>
    %9 = arith.maximumf %7, %8 : vector<8x128xf32>
    %10 = vector.extract_strided_slice %6 {offsets = [0, 128], sizes = [8, 128], strides = [1, 1]} : vector<8x256xf32> to vector<8x128xf32>
    %11 = arith.negf %10 : vector<8x128xf32>
    %12 = math.exp %11 : vector<8x128xf32>
    %cst_6 = arith.constant 1.000000e+00 : f32
    %13 = vector.broadcast %cst_6 : f32 to vector<8x128xf32>
    %14 = arith.addf %13, %12 : vector<8x128xf32>
    %15 = arith.divf %13, %14 : vector<8x128xf32>
    %16 = arith.mulf %15, %9 : vector<8x128xf32>
    %cst_7 = arith.constant 1.000000e+00 : f32
    %17 = vector.broadcast %cst_7 : f32 to vector<8x128xf32>
    %18 = arith.subf %17, %15 : vector<8x128xf32>
    %19 = arith.mulf %18, %0 : vector<8x128xf32>
    %20 = arith.addf %16, %19 : vector<8x128xf32>
    %c0_8 = arith.constant 0 : index
    %c0_9 = arith.constant 0 : index
    %21 = vector.load %arg4[%c0_8, %c0_9] : memref<8x128xf32, #tpu.memory_space<vmem>>, vector<8x128xf32>
    tpu.vector_store %arg4[%c0_8, %c0_9], %20 {strides = array<i32>} : memref<8x128xf32, #tpu.memory_space<vmem>>, vector<8x128xf32>,
    return
  }
  func.func @transform_0(%arg0: i32) -> (i32, i32) {
    %c0_i32 = arith.constant 0 : i32
    %c0_i32_0 = arith.constant 0 : i32
    return %arg0, %c0_i32 : i32, i32
  }
  func.func @transform_1(%arg0: i32) -> (i32, i32) {
    %c0_i32 = arith.constant 0 : i32
    %c0_i32_0 = arith.constant 0 : i32
    %c0_i32_1 = arith.constant 0 : i32
    return %c0_i32, %c0_i32_0 : i32, i32
  }
  func.func @transform_2(%arg0: i32) -> (i32, i32) {
    %c0_i32 = arith.constant 0 : i32
    %c0_i32_0 = arith.constant 0 : i32
    %c0_i32_1 = arith.constant 0 : i32
    return %c0_i32, %c0_i32_0 : i32, i32
  }
  func.func @transform_3(%arg0: i32) -> (i32, i32) {
    %c0_i32 = arith.constant 0 : i32
    %c0_i32_0 = arith.constant 0 : i32
    return %arg0, %c0_i32 : i32, i32
  }
}

</mosaic_0001>

<llo_original>
// kernel: tpu_custom_call.1
$region0: #{tpu_custom_call.1}
  #allocation0 [shape = 'u32[]', space=smem, size = 0x4, offset = 0x4, fixed_abs, tag = 'smem constant byte address 0x4 - core index']
  #allocation1 [shape = 'u32[144,128]{1,0:T(1,128)}', space=vmem, size = 0x12000, scoped, tag = 'internal scratch']
  %s0 = inlined_call_operand.hbm [shape: f32[8,128], index: 0, kind: input, shape index: {}]
  %s1 = inlined_call_operand.hbm [shape: bf16[128,256], index: 1, kind: input, shape index: {}]
  %s2 = inlined_call_operand.vmem [shape: f32[1,256], index: 2, kind: input, shape index: {}]
  %s3 = inlined_call_operand.hbm [shape: f32[8,128], index: 3, kind: output, shape index: {}]
  %s4 = sld [smem:[#allocation0]]
  $region30: #{tpu_custom_call.1} parent=0
    _
  %s6 = ssub.s32 1, %s4
  %s7 = scalar_select 0, %s6, %s4
  $region1: #{tpu_custom_call.1} parent=0
    #allocation2 [shape = 'u8[4096]{0}', space=vmem, size = 0x1000, scoped, tag = 'input window, operand 0, single buffered']
    #allocation3 [shape = 's32[1]{0}', space=sflag, size = 0x4, scoped, tag = 'scoped memory for tpu_custom_call.1']
    #allocation4 [shape = 's32[1]{0}', space=sflag, size = 0x4, scoped, tag = 'scoped memory for tpu_custom_call.1']
    #allocation5 [shape = 'u8[65536]{0}', space=vmem, size = 0x10000, scoped, tag = 'input window, operand 1, single buffered']
    #allocation6 [shape = 's32[1]{0}', space=sflag, size = 0x4, scoped, tag = 'scoped memory for tpu_custom_call.1']
    #allocation7 [shape = 'u8[4096]{0}', space=vmem, size = 0x1000, scoped, tag = 'output window, operand 0, single buffered']
    %8 = vsyncpa [#allocation3], 0
    %9 = vsyncpa [#allocation6], 0
    %10 = vsyncpa [#allocation4], 0
    // Predicated region
    $region2: #{tpu_custom_call.1} parent=1 // pred_check
      _
    $region3: #{tpu_custom_call.1} parent=1 // pred_check_branch
      %12 = sbr.rel (0) target = $region5
    $region4: #{tpu_custom_call.1} parent=1 // pred_region
      %s14 = ssub.s32 128, 128
      %15 = vsyncadd [#allocation3], %s14
      %s17 = sshll.u32 [#allocation2], 4
      %s18 = int_to_ptr.vmem [resolvable:$true] %s17
      %20 = dma.hbm_to_vmem [thread:$0]  %s0, 128, %s18, [#allocation3]
    $region5: #{tpu_custom_call.1} parent=1 // pred_fallthru
      _
    // Predicated region
    $region6: #{tpu_custom_call.1} parent=1 // pred_check
      _
    $region7: #{tpu_custom_call.1} parent=1 // pred_check_branch
      %22 = sbr.rel (0) target = $region9
    $region8: #{tpu_custom_call.1} parent=1 // pred_region
      %s24 = ssub.s32 2048, 2048
      %25 = vsyncadd [#allocation6], %s24
      %s26 = sshll.u32 [#allocation5], 4
      %s27 = int_to_ptr.vmem [resolvable:$true] %s26
      %32 = dma.hbm_to_vmem [thread:$0]  %s1, 2048, %s27, [#allocation6], 128, 128, 8
    $region9: #{tpu_custom_call.1} parent=1 // pred_fallthru
      _
    // Predicated region
    $region10: #{tpu_custom_call.1} parent=1 // pred_check
      _
    $region11: #{tpu_custom_call.1} parent=1 // pred_check_branch
      %34 = sbr.rel (0) target = $region13
    $region12: #{tpu_custom_call.1} parent=1 // pred_region
      _
    $region13: #{tpu_custom_call.1} parent=1 // pred_fallthru
      _
    // Predicated region
    $region14: #{tpu_custom_call.1} parent=1 // pred_check
      _
    $region15: #{tpu_custom_call.1} parent=1 // pred_check_branch
      %36 = sbr.rel (0) target = $region17
    $region16: #{tpu_custom_call.1} parent=1 // pred_region
      %37 = dma.done [#allocation3], 128
    $region17: #{tpu_custom_call.1} parent=1 // pred_fallthru
      _
    // Predicated region
    $region18: #{tpu_custom_call.1} parent=1 // pred_check
      _
    $region19: #{tpu_custom_call.1} parent=1 // pred_check_branch
      %39 = sbr.rel (0) target = $region21
    $region20: #{tpu_custom_call.1} parent=1 // pred_region
      %40 = dma.done [#allocation6], 2048
    $region21: #{tpu_custom_call.1} parent=1 // pred_fallthru
      _
    %v42 = vld [vmem:[#allocation2] sm:$0xff]
    %v43 = vpack.c.bf16 %v42, %v42
    %v44 = vld [vmem:[#allocation5] sm:$0xff]
    %v45 = vld [vmem:[#allocation5 + $0x8] sm:$0xff]
    %v46 = vld [vmem:[#allocation5 + $0x10] sm:$0xff]
    %v47 = vld [vmem:[#allocation5 + $0x18] sm:$0xff]
    %v48 = vld [vmem:[#allocation5 + $0x20] sm:$0xff]
    %v49 = vld [vmem:[#allocation5 + $0x28] sm:$0xff]
    %v50 = vld [vmem:[#allocation5 + $0x30] sm:$0xff]
    %v51 = vld [vmem:[#allocation5 + $0x38] sm:$0xff]
    %v52 = vld [vmem:[#allocation5 + $0x40] sm:$0xff]
    %v53 = vld [vmem:[#allocation5 + $0x48] sm:$0xff]
    %v54 = vld [vmem:[#allocation5 + $0x50] sm:$0xff]
    %v55 = vld [vmem:[#allocation5 + $0x58] sm:$0xff]
    %v56 = vld [vmem:[#allocation5 + $0x60] sm:$0xff]
    %v57 = vld [vmem:[#allocation5 + $0x68] sm:$0xff]
    %v58 = vld [vmem:[#allocation5 + $0x70] sm:$0xff]
    %v59 = vld [vmem:[#allocation5 + $0x78] sm:$0xff]
    %v60 = vld [vmem:[%s2] sm:$0x3]
    %v62 = vlaneseq
    %v63 = vshrl.u32 %v62, 7
    %v64 = vsub.s32 0, %v63
    %v65 = vrot.slane %v60, %v64
    %v66 = vlaneseq
    %v67 = vshrl.u32 %v66, 7
    %v68 = vsub.s32 1, %v67
    %v69 = vrot.slane %v60, %v68
    %v88 = vunpack.c.l.b16 %v44
    %v89 = vunpack.c.h.b16 %v44
    %v90 = vunpack.c.l.b16 %v45
    %v91 = vunpack.c.h.b16 %v45
    %v92 = vunpack.c.l.b16 %v46
    %v93 = vunpack.c.h.b16 %v46
    %v94 = vunpack.c.l.b16 %v47
    %v95 = vunpack.c.h.b16 %v47
    %v96 = vunpack.c.l.b16 %v48
    %v97 = vunpack.c.h.b16 %v48
    %v98 = vunpack.c.l.b16 %v49
    %v99 = vunpack.c.h.b16 %v49
    %v100 = vunpack.c.l.b16 %v50
    %v101 = vunpack.c.h.b16 %v50
    %v102 = vunpack.c.l.b16 %v51
    %v103 = vunpack.c.h.b16 %v51
    %v104 = vunpack.c.l.b16 %v52
    %v105 = vunpack.c.h.b16 %v52
    %v106 = vunpack.c.l.b16 %v53
    %v107 = vunpack.c.h.b16 %v53
    %v108 = vunpack.c.l.b16 %v54
    %v109 = vunpack.c.h.b16 %v54
    %v110 = vunpack.c.l.b16 %v55
    %v111 = vunpack.c.h.b16 %v55
    %v112 = vunpack.c.l.b16 %v56
    %v113 = vunpack.c.h.b16 %v56
    %v114 = vunpack.c.l.b16 %v57
    %v115 = vunpack.c.h.b16 %v57
    %v116 = vunpack.c.l.b16 %v58
    %v117 = vunpack.c.h.b16 %v58
    %v118 = vunpack.c.l.b16 %v59
    %v119 = vunpack.c.h.b16 %v59
    %v120 = vpack.c.b16 %v90, %v88
    %v121 = vpack.c.b16 %v91, %v89
    %v122 = vpack.c.b16 %v94, %v92
    %v123 = vpack.c.b16 %v95, %v93
    %v124 = vpack.c.b16 %v98, %v96
    %v125 = vpack.c.b16 %v99, %v97
    %v126 = vpack.c.b16 %v102, %v100
    %v127 = vpack.c.b16 %v103, %v101
    %v128 = vpack.c.b16 %v106, %v104
    %v129 = vpack.c.b16 %v107, %v105
    %v130 = vpack.c.b16 %v110, %v108
    %v131 = vpack.c.b16 %v111, %v109
    %v132 = vpack.c.b16 %v114, %v112
    %v133 = vpack.c.b16 %v115, %v113
    %v134 = vpack.c.b16 %v118, %v116
    %v135 = vpack.c.b16 %v119, %v117
    %152 = vmatprep.subr.bf16.mxu0 %v121
    %153 = vmatpush1.bf16.msra.mxu0 %v120
    %154 = vmatprep.subr.bf16.mxu0 %v123
    %155 = vmatpush1.bf16.msra.mxu0 %v122
    %156 = vmatprep.subr.bf16.mxu0 %v125
    %157 = vmatpush1.bf16.msra.mxu0 %v124
    %158 = vmatprep.subr.bf16.mxu0 %v127
    %159 = vmatpush1.bf16.msra.mxu0 %v126
    %160 = vmatprep.subr.bf16.mxu0 %v129
    %161 = vmatpush1.bf16.msra.mxu0 %v128
    %162 = vmatprep.subr.bf16.mxu0 %v131
    %163 = vmatpush1.bf16.msra.mxu0 %v130
    %164 = vmatprep.subr.bf16.mxu0 %v133
    %165 = vmatpush1.bf16.msra.mxu0 %v132
    %166 = vmatprep.subr.bf16.mxu0 %v135
    %167 = vmatpush1.bf16.msra.mxu0 %v134
    %168 = vmatprep.subr.bf16.mxu0 0
    %169 = vmatpush1.bf16.msra.mxu0 0
    %170 = vmatprep.subr.bf16.mxu0 0
    %171 = vmatpush1.bf16.msra.mxu0 0
    %172 = vmatprep.subr.bf16.mxu0 0
    %173 = vmatpush1.bf16.msra.mxu0 0
    %174 = vmatprep.subr.bf16.mxu0 0
    %175 = vmatpush1.bf16.msra.mxu0 0
    %176 = vmatprep.subr.bf16.mxu0 0
    %177 = vmatpush1.bf16.msra.mxu0 0
    %178 = vmatprep.subr.bf16.mxu0 0
    %179 = vmatpush1.bf16.msra.mxu0 0
    %180 = vmatprep.subr.bf16.mxu0 0
    %181 = vmatpush1.bf16.msra.mxu0 0
    %182 = vmatprep.subr.bf16.mxu0 0
    %183 = vmatpush1.bf16.msra.mxu0 0
    %184 = vmatprep.mubr.bf16.mxu0 0
    %185 = vmatmul.mubr.bf16.gmra.mrb[0].mxu0 %v43
    %v186 = vpop.f32.mrb[0].mxu0
    %v187 = vadd.f32 %v65, %v186
    %v188 = vpop.f32.mrb[0].mxu0
    %v189 = vadd.f32 %v69, %v188
    %v190 = vpop.f32.mrb[0].mxu0
    %v191 = vpop.f32.mrb[0].mxu0
    %192 = vdwg.mxu0
    %v193 = vmax.f32 %v187, 0.0
    %v194 = vxor.u32 %v189, 2147483648
    %v195 = vmul.f32 %v194, 1.442695
    %v196 = vpow.pop %v195
    %v197 = vadd.f32 %v196, 1.0
    %v198 = vrcp.pop %v197
    %v199 = vmul.f32 1.0, %v198
    %v200 = vmul.f32 %v199, %v193
    %v201 = vsub.f32 1.0, %v199
    %v202 = vmul.f32 %v201, %v42
    %v203 = vadd.f32 %v200, %v202
    %204 = vst [vmem:[#allocation7] sm:$0xff] %v203
    // Predicated region
    $region22: #{tpu_custom_call.1} parent=1 // pred_check
      _
    $region23: #{tpu_custom_call.1} parent=1 // pred_check_branch
      %206 = sbr.rel (0) target = $region25
    $region24: #{tpu_custom_call.1} parent=1 // pred_region
      %s208 = ssub.s32 128, 128
      %209 = vsyncadd [#allocation4], %s208
      %s211 = sshll.u32 [#allocation7], 4
      %s212 = int_to_ptr.vmem [resolvable:$true] %s211
      %214 = dma.vmem_to_hbm [thread:$0]  %s212, 128, %s3, [#allocation4]
    $region25: #{tpu_custom_call.1} parent=1 // pred_fallthru
      _
    // Predicated region
    $region26: #{tpu_custom_call.1} parent=1 // pred_check
      _
    $region27: #{tpu_custom_call.1} parent=1 // pred_check_branch
      %216 = sbr.rel (0) target = $region29
    $region28: #{tpu_custom_call.1} parent=1 // pred_region
      %217 = dma.done [#allocation4], 128
    $region29: #{tpu_custom_call.1} parent=1 // pred_fallthru
      _
    %218 = vsyncpa [#allocation3], 1
    %219 = vsyncpa [#allocation6], 1
    %220 = vsyncpa [#allocation4], 1

</llo_original>
